<compile_context>
chip_gen: v7x
topology: tpu7x:2x2x1
jax: 0.10.0
libtpu: 0.0.40
codegen_flags: <defaults>
</compile_context>

<pallas_src>
import functools

import jax
import jax.numpy as jnp
from jax.experimental import pallas as pl
from jax.experimental.pallas import tpu as pltpu


OUT_PAD = 128  # lane-dense width for the padded final layer


def default_epilogue_dtype():
    """bf16 epilogue on chips with a bf16 VPU (v6e/v7x); f32 on v5e and older.
    Detection failure falls back to bf16 (correct everywhere, just slower on v5e)."""
    try:
        kind = jax.devices()[0].device_kind.lower()
    except Exception:
        return jnp.bfloat16
    if any(v in kind for v in ("v2", "v3", "v4", "v5")):
        return jnp.float32
    return jnp.bfloat16


def ramnet_kernel(x_ref,
                  w1_ref, b1_ref,
                  w2_ref, b2_ref,
                  w3_ref, b3_ref,
                  w4_ref, b4_ref,
                  o_ref):
    # x arrives in bf16; the 1/255 scale is folded into w1 at pack time.
    # Dots run on the MXU in bf16 with f32 accumulation; the bias+ReLU
    # epilogue dtype follows the packed bias dtype (bf16 on v6e/v7x, f32 on v5e).
    ep = b1_ref.dtype
    x = x_ref[...]

    h = jnp.dot(x, w1_ref[...], preferred_element_type=jnp.float32)
    h = jnp.maximum(h.astype(ep) + b1_ref[...], 0)

    h = jnp.dot(h.astype(jnp.bfloat16), w2_ref[...],
                preferred_element_type=jnp.float32)
    h = jnp.maximum(h.astype(ep) + b2_ref[...], 0)

    h = jnp.dot(h.astype(jnp.bfloat16), w3_ref[...],
                preferred_element_type=jnp.float32)
    h = jnp.maximum(h.astype(ep) + b3_ref[...], 0)

    # Final layer: f32 bias add, written to a lane-dense 128-wide bf16 slab.
    out = jnp.dot(h.astype(jnp.bfloat16), w4_ref[...],
                  preferred_element_type=jnp.float32) + b4_ref[...]
    o_ref[...] = out.astype(o_ref.dtype)


def _choose_block_b(B, block_b):
    bb = min(block_b, B)
    if B >= 32:
        # Keep >=2 balanced grid steps: lets v7x's two TensorCores both work
        # and pipelines the x/out DMAs against compute.
        bb = min(bb, max(16, ((B // 2) // 16) * 16))
    if bb < B:
        bb = max(16, (bb // 16) * 16)  # bf16 (16,128) sublane tiling
    return bb


def ramnet_forward(x, kparams, *, d_out, block_b=1024):
    """x: (B, D_in) any float dtype (cast to bf16 here; lossless for RAM bytes).
    kparams: packed params from pack_params().  Returns (B, d_out) float32.
    Note: on v5e, sweeping block_b in {256, 512, 1024} may be worthwhile."""
    B, D_in = x.shape
    d_pad = kparams["w4"].shape[1]

    x = x.astype(jnp.bfloat16)          # no-op if caller already passes bf16
    bb = _choose_block_b(B, block_b)
    grid = (pl.cdiv(B, bb),)

    def full_spec(arr):
        # Grid-invariant whole-array block: constant index_map -> weights are
        # DMA'd once and stay resident across all batch tiles.
        return pl.BlockSpec(arr.shape, lambda i: (0, 0))

    in_specs = [
        pl.BlockSpec((bb, D_in), lambda i: (i, 0)),   # x: tiled over batch
        full_spec(kparams["w1"]), full_spec(kparams["b1"]),
        full_spec(kparams["w2"]), full_spec(kparams["b2"]),
        full_spec(kparams["w3"]), full_spec(kparams["b3"]),
        full_spec(kparams["w4"]), full_spec(kparams["b4"]),
    ]
    out_specs = pl.BlockSpec((bb, d_pad), lambda i: (i, 0))

    out_padded = pl.pallas_call(
        ramnet_kernel,
        out_shape=jax.ShapeDtypeStruct((B, d_pad), jnp.bfloat16),
        grid_spec=pl.GridSpec(
            grid=grid,
            in_specs=in_specs,
            out_specs=out_specs,
        ),
        compiler_params=pltpu.CompilerParams(
            dimension_semantics=("parallel",),
            vmem_limit_bytes=32 * 1024 * 1024,  # explicit; safe on v5e/v6e/v7x
        ),
    )(x,
      kparams["w1"], kparams["b1"],
      kparams["w2"], kparams["b2"],
      kparams["w3"], kparams["b3"],
      kparams["w4"], kparams["b4"])

    # Slice + upcast fuse with the slab when this function is jitted.
    # TODO(synk): for pure inference, fuse the action argmax over the d_out
    # columns into the kernel to shrink output traffic to ~B*4 bytes.
    return out_padded[:, :d_out].astype(jnp.float32)


def init_params(key, d_in, d_out):
    """f32 params mirroring RamNet.__init__ (weights stored as (in, out))."""
    dims = [(d_in, 256), (256, 128), (128, 64), (64, d_out)]
    params = {}
    for idx, (fan_in, fan_out) in enumerate(dims, start=1):
        key, kw, kb = jax.random.split(key, 3)
        bound = 1.0 / jnp.sqrt(jnp.float32(fan_in))  # PyTorch Linear default range
        params[f"w{idx}"] = jax.random.uniform(
            kw, (fan_in, fan_out), jnp.float32, -bound, bound)
        params[f"b{idx}"] = jax.random.uniform(
            kb, (1, fan_out), jnp.float32, -bound, bound)
    return params


def pack_params(params, d_out, *, out_pad=OUT_PAD, epilogue_dtype=jnp.bfloat16):
    """One-time kernel-side parameter transform:
       - fold the 1/255 input scale into w1,
       - cast weights to bf16 (bf16 MXU path, f32 accumulate),
       - cast hidden-layer biases to the epilogue dtype (bf16 on v6e/v7x, f32 on v5e),
       - zero-pad the last layer to a lane-dense width (out_pad lanes), bias kept f32."""
    pad = out_pad - d_out
    assert pad >= 0
    return {
        "w1": (params["w1"] * (1.0 / 255.0)).astype(jnp.bfloat16),
        "b1": params["b1"].astype(epilogue_dtype),
        "w2": params["w2"].astype(jnp.bfloat16),
        "b2": params["b2"].astype(epilogue_dtype),
        "w3": params["w3"].astype(jnp.bfloat16),
        "b3": params["b3"].astype(epilogue_dtype),
        "w4": jnp.pad(params["w4"], ((0, 0), (0, pad))).astype(jnp.bfloat16),
        "b4": jnp.pad(params["b4"], ((0, 0), (0, pad))).astype(jnp.float32),
    }


def ramnet_reference(x, params):
    """Pure-JAX f32 reference with the original module semantics."""
    h = x / 255.0
    h = jnp.maximum(h @ params["w1"] + params["b1"], 0.0)
    h = jnp.maximum(h @ params["w2"] + params["b2"], 0.0)
    h = jnp.maximum(h @ params["w3"] + params["b3"], 0.0)
    return h @ params["w4"] + params["b4"]


def ramnet_reference_packed(x, kp, d_out):
    """Pure-JAX reference using exactly the packed parameters and the kernel's
    dtype schedule (bf16 dots, epilogue dtype from the bias dtype, bf16 slab
    write) — only accumulation order can differ from the Pallas kernel."""
    ep = kp["b1"].dtype
    h = jnp.dot(x.astype(jnp.bfloat16), kp["w1"], preferred_element_type=jnp.float32)
    h = jnp.maximum(h.astype(ep) + kp["b1"], 0)
    h = jnp.dot(h.astype(jnp.bfloat16), kp["w2"], preferred_element_type=jnp.float32)
    h = jnp.maximum(h.astype(ep) + kp["b2"], 0)
    h = jnp.dot(h.astype(jnp.bfloat16), kp["w3"], preferred_element_type=jnp.float32)
    h = jnp.maximum(h.astype(ep) + kp["b3"], 0)
    out = jnp.dot(h.astype(jnp.bfloat16), kp["w4"],
                  preferred_element_type=jnp.float32) + kp["b4"]
    return out.astype(jnp.bfloat16)[:, :d_out].astype(jnp.float32)


if __name__ == "__main__":
    key = jax.random.PRNGKey(0)
    B, D_IN, D_OUT = 64, 128, 4     # Atari RAM: 128 bytes, 4 actions

    key, kx, kp_key = jax.random.split(key, 3)
    # RAM observations are integer bytes 0..255 -> exactly representable in bf16.
    x_bytes = jax.random.randint(kx, (B, D_IN), 0, 256)
    x_f32 = x_bytes.astype(jnp.float32)      # original torch-side dtype
    x_bf16 = x_bytes.astype(jnp.bfloat16)    # lossless; halves input DMA bytes

    epilogue_dtype = default_epilogue_dtype()
    params = init_params(kp_key, D_IN, D_OUT)
    kparams = pack_params(params, D_OUT, epilogue_dtype=epilogue_dtype)

    # jit so the post-kernel slice/upcast fuse with the padded slab.
    # With B=64 the auto tile cap yields block_b=32 -> grid=(2,), exercising
    # the multi-step / both-TensorCore path even at this small test size.
    fwd = jax.jit(functools.partial(ramnet_forward, d_out=D_OUT))
    out = jax.block_until_ready(fwd(x_bf16, kparams))
    assert out.shape == (B, D_OUT)
    assert out.dtype == jnp.float32

    # Tight check: identical packed params + dtype schedule; only accumulation
    # order can differ.
    ref_q = ramnet_reference_packed(x_bf16, kparams, D_OUT)
    assert jnp.allclose(out, ref_q, atol=1e-3, rtol=1e-3), \
        float(jnp.max(jnp.abs(out - ref_q)))

    # Loose check vs. the original f32 module semantics (bf16 quantization only).
    ref = ramnet_reference(x_f32, params)
    assert jnp.allclose(out, ref, atol=2e-2, rtol=2e-2), \
        float(jnp.max(jnp.abs(out - ref)))

    print("KERNEL_OK")
</pallas_src>

<mosaic_0001>
module attributes {stable_mosaic.version = 11 : i64} {
  func.func @ramnet_kernel(%arg0: i32, %arg1: memref<32x128xbf16, #tpu.memory_space<vmem>>, %arg2: memref<128x256xbf16, #tpu.memory_space<vmem>>, %arg3: memref<1x256xbf16, #tpu.memory_space<vmem>>, %arg4: memref<256x128xbf16, #tpu.memory_space<vmem>>, %arg5: memref<1x128xbf16, #tpu.memory_space<vmem>>, %arg6: memref<128x64xbf16, #tpu.memory_space<vmem>>, %arg7: memref<1x64xbf16, #tpu.memory_space<vmem>>, %arg8: memref<64x128xbf16, #tpu.memory_space<vmem>>, %arg9: memref<1x128xf32, #tpu.memory_space<vmem>>, %arg10: memref<32x128xbf16, #tpu.memory_space<vmem>>) attributes {dimension_semantics = [#tpu.dimension_semantics<parallel>], iteration_bounds = array<i64: 2>, scalar_prefetch = 0 : i64, scratch_operands = 0 : i64, tpu.core_type = #tpu.core_type<tc>, window_params = [{transform_indices = @transform_0, window_bounds = array<i64: 32, 128>}, {pipeline_mode = #tpu.pipeline_mode<synchronous>, transform_indices = @transform_1, window_bounds = array<i64: 128, 256>}, {pipeline_mode = #tpu.pipeline_mode<synchronous>, transform_indices = @transform_2, window_bounds = array<i64: 1, 256>}, {pipeline_mode = #tpu.pipeline_mode<synchronous>, transform_indices = @transform_3, window_bounds = array<i64: 256, 128>}, {pipeline_mode = #tpu.pipeline_mode<synchronous>, transform_indices = @transform_4, window_bounds = array<i64: 1, 128>}, {pipeline_mode = #tpu.pipeline_mode<synchronous>, transform_indices = @transform_5, window_bounds = array<i64: 128, 64>}, {pipeline_mode = #tpu.pipeline_mode<synchronous>, transform_indices = @transform_6, window_bounds = array<i64: 1, 64>}, {pipeline_mode = #tpu.pipeline_mode<synchronous>, transform_indices = @transform_7, window_bounds = array<i64: 64, 128>}, {pipeline_mode = #tpu.pipeline_mode<synchronous>, transform_indices = @transform_8, window_bounds = array<i64: 1, 128>}, {transform_indices = @transform_9, window_bounds = array<i64: 32, 128>}]} {
    %c0 = arith.constant 0 : index
    %c0_0 = arith.constant 0 : index
    %0 = vector.load %arg1[%c0, %c0_0] : memref<32x128xbf16, #tpu.memory_space<vmem>>, vector<32x128xbf16>
    %c0_1 = arith.constant 0 : index
    %c0_2 = arith.constant 0 : index
    %1 = vector.load %arg2[%c0_1, %c0_2] : memref<128x256xbf16, #tpu.memory_space<vmem>>, vector<128x256xbf16>
    %cst = arith.constant dense<0.000000e+00> : vector<32x256xf32>
    %2 = tpu.matmul %0, %1, %cst {dimension_numbers = #tpu.dot_dimension_numbers<[1], [0], [0], [1], [0, 0, 1, 1], [], []>} : vector<32x128xbf16>, vector<128x256xbf16>, vector<32x256xf32> -> vector<32x256xf32>
    %3 = arith.truncf %2 : vector<32x256xf32> to vector<32x256xbf16>
    %c0_3 = arith.constant 0 : index
    %c0_4 = arith.constant 0 : index
    %4 = vector.load %arg3[%c0_3, %c0_4] : memref<1x256xbf16, #tpu.memory_space<vmem>>, vector<1x256xbf16>
    %5 = vector.broadcast %4 : vector<1x256xbf16> to vector<32x256xbf16>
    %6 = arith.addf %3, %5 : vector<32x256xbf16>
    %cst_5 = arith.constant 0.000000e+00 : bf16
    %7 = vector.broadcast %cst_5 : bf16 to vector<32x256xbf16>
    %8 = arith.maximumf %6, %7 : vector<32x256xbf16>
    %c0_6 = arith.constant 0 : index
    %c0_7 = arith.constant 0 : index
    %9 = vector.load %arg4[%c0_6, %c0_7] : memref<256x128xbf16, #tpu.memory_space<vmem>>, vector<256x128xbf16>
    %cst_8 = arith.constant dense<0.000000e+00> : vector<32x128xf32>
    %10 = tpu.matmul %8, %9, %cst_8 {dimension_numbers = #tpu.dot_dimension_numbers<[1], [0], [0], [1], [0, 0, 1, 1], [], []>} : vector<32x256xbf16>, vector<256x128xbf16>, vector<32x128xf32> -> vector<32x128xf32>
    %11 = arith.truncf %10 : vector<32x128xf32> to vector<32x128xbf16>
    %c0_9 = arith.constant 0 : index
    %c0_10 = arith.constant 0 : index
    %12 = vector.load %arg5[%c0_9, %c0_10] : memref<1x128xbf16, #tpu.memory_space<vmem>>, vector<1x128xbf16>
    %13 = vector.broadcast %12 : vector<1x128xbf16> to vector<32x128xbf16>
    %14 = arith.addf %11, %13 : vector<32x128xbf16>
    %cst_11 = arith.constant 0.000000e+00 : bf16
    %15 = vector.broadcast %cst_11 : bf16 to vector<32x128xbf16>
    %16 = arith.maximumf %14, %15 : vector<32x128xbf16>
    %c0_12 = arith.constant 0 : index
    %c0_13 = arith.constant 0 : index
    %17 = vector.load %arg6[%c0_12, %c0_13] : memref<128x64xbf16, #tpu.memory_space<vmem>>, vector<128x64xbf16>
    %cst_14 = arith.constant dense<0.000000e+00> : vector<32x64xf32>
    %18 = tpu.matmul %16, %17, %cst_14 {dimension_numbers = #tpu.dot_dimension_numbers<[1], [0], [0], [1], [0, 0, 1, 1], [], []>} : vector<32x128xbf16>, vector<128x64xbf16>, vector<32x64xf32> -> vector<32x64xf32>
    %19 = arith.truncf %18 : vector<32x64xf32> to vector<32x64xbf16>
    %c0_15 = arith.constant 0 : index
    %c0_16 = arith.constant 0 : index
    %20 = vector.load %arg7[%c0_15, %c0_16] : memref<1x64xbf16, #tpu.memory_space<vmem>>, vector<1x64xbf16>
    %21 = vector.broadcast %20 : vector<1x64xbf16> to vector<32x64xbf16>
    %22 = arith.addf %19, %21 : vector<32x64xbf16>
    %cst_17 = arith.constant 0.000000e+00 : bf16
    %23 = vector.broadcast %cst_17 : bf16 to vector<32x64xbf16>
    %24 = arith.maximumf %22, %23 : vector<32x64xbf16>
    %c0_18 = arith.constant 0 : index
    %c0_19 = arith.constant 0 : index
    %25 = vector.load %arg8[%c0_18, %c0_19] : memref<64x128xbf16, #tpu.memory_space<vmem>>, vector<64x128xbf16>
    %cst_20 = arith.constant dense<0.000000e+00> : vector<32x128xf32>
    %26 = tpu.matmul %24, %25, %cst_20 {dimension_numbers = #tpu.dot_dimension_numbers<[1], [0], [0], [1], [0, 0, 1, 1], [], []>} : vector<32x64xbf16>, vector<64x128xbf16>, vector<32x128xf32> -> vector<32x128xf32>
    %c0_21 = arith.constant 0 : index
    %c0_22 = arith.constant 0 : index
    %27 = vector.load %arg9[%c0_21, %c0_22] : memref<1x128xf32, #tpu.memory_space<vmem>>, vector<1x128xf32>
    %28 = vector.broadcast %27 : vector<1x128xf32> to vector<32x128xf32>
    %29 = arith.addf %26, %28 : vector<32x128xf32>
    %30 = arith.truncf %29 : vector<32x128xf32> to vector<32x128xbf16>
    %c0_23 = arith.constant 0 : index
    %c0_24 = arith.constant 0 : index
    %31 = vector.load %arg10[%c0_23, %c0_24] : memref<32x128xbf16, #tpu.memory_space<vmem>>, vector<32x128xbf16>
    tpu.vector_store %arg10[%c0_23, %c0_24], %30 {strides = array<i32>} : memref<32x128xbf16, #tpu.memory_space<vmem>>, vector<32x128xbf16>,
    return
  }
  func.func @transform_0(%arg0: i32) -> (i32, i32) {
    %c0_i32 = arith.constant 0 : i32
    %c0_i32_0 = arith.constant 0 : i32
    return %arg0, %c0_i32 : i32, i32
  }
  func.func @transform_1(%arg0: i32) -> (i32, i32) {
    %c0_i32 = arith.constant 0 : i32
    %c0_i32_0 = arith.constant 0 : i32
    %c0_i32_1 = arith.constant 0 : i32
    return %c0_i32, %c0_i32_0 : i32, i32
  }
  func.func @transform_2(%arg0: i32) -> (i32, i32) {
    %c0_i32 = arith.constant 0 : i32
    %c0_i32_0 = arith.constant 0 : i32
    %c0_i32_1 = arith.constant 0 : i32
    return %c0_i32, %c0_i32_0 : i32, i32
  }
  func.func @transform_3(%arg0: i32) -> (i32, i32) {
    %c0_i32 = arith.constant 0 : i32
    %c0_i32_0 = arith.constant 0 : i32
    %c0_i32_1 = arith.constant 0 : i32
    return %c0_i32, %c0_i32_0 : i32, i32
  }
  func.func @transform_4(%arg0: i32) -> (i32, i32) {
    %c0_i32 = arith.constant 0 : i32
    %c0_i32_0 = arith.constant 0 : i32
    %c0_i32_1 = arith.constant 0 : i32
    return %c0_i32, %c0_i32_0 : i32, i32
  }
  func.func @transform_5(%arg0: i32) -> (i32, i32) {
    %c0_i32 = arith.constant 0 : i32
    %c0_i32_0 = arith.constant 0 : i32
    %c0_i32_1 = arith.constant 0 : i32
    return %c0_i32, %c0_i32_0 : i32, i32
  }
  func.func @transform_6(%arg0: i32) -> (i32, i32) {
    %c0_i32 = arith.constant 0 : i32
    %c0_i32_0 = arith.constant 0 : i32
    %c0_i32_1 = arith.constant 0 : i32
    return %c0_i32, %c0_i32_0 : i32, i32
  }
  func.func @transform_7(%arg0: i32) -> (i32, i32) {
    %c0_i32 = arith.constant 0 : i32
    %c0_i32_0 = arith.constant 0 : i32
    %c0_i32_1 = arith.constant 0 : i32
    return %c0_i32, %c0_i32_0 : i32, i32
  }
  func.func @transform_8(%arg0: i32) -> (i32, i32) {
    %c0_i32 = arith.constant 0 : i32
    %c0_i32_0 = arith.constant 0 : i32
    %c0_i32_1 = arith.constant 0 : i32
    return %c0_i32, %c0_i32_0 : i32, i32
  }
  func.func @transform_9(%arg0: i32) -> (i32, i32) {
    %c0_i32 = arith.constant 0 : i32
    %c0_i32_0 = arith.constant 0 : i32
    return %arg0, %c0_i32 : i32, i32
  }
}

</mosaic_0001>

<llo_original>
// kernel: ramnet_forward.1
$region0: #{ramnet_forward.1}
  #allocation0 [shape = 'u32[]', space=smem, size = 0x4, offset = 0x4, fixed_abs, tag = 'smem constant byte address 0x4 - core index']
  #allocation1 [shape = 'u32[144,128]{1,0:T(1,128)}', space=vmem, size = 0x12000, scoped, tag = 'internal scratch']
  %s0 = inlined_call_operand.vmem [shape: bf16[64,128], index: 0, kind: input, shape index: {}]
  %s1 = inlined_call_operand.hbm [shape: bf16[128,256], index: 1, kind: input, shape index: {}]
  %s2 = inlined_call_operand.vmem [shape: bf16[1,256], index: 2, kind: input, shape index: {}]
  %s3 = inlined_call_operand.hbm [shape: bf16[256,128], index: 3, kind: input, shape index: {}]
  %s4 = inlined_call_operand.vmem [shape: bf16[1,128], index: 4, kind: input, shape index: {}]
  %s5 = inlined_call_operand.vmem [shape: bf16[128,64], index: 5, kind: input, shape index: {}]
  %s6 = inlined_call_operand.vmem [shape: bf16[1,64], index: 6, kind: input, shape index: {}]
  %s7 = inlined_call_operand.vmem [shape: bf16[64,128], index: 7, kind: input, shape index: {}]
  %s8 = inlined_call_operand.vmem [shape: f32[1,128], index: 8, kind: input, shape index: {}]
  %s9 = inlined_call_operand.vmem [shape: bf16[64,128], index: 9, kind: output, shape index: {}]
  %s10 = sld [smem:[#allocation0]]
  $region77: #{ramnet_forward.1} parent=0
    _
  %s12 = ssub.s32 1, %s10
  %s13 = scalar_select 0, %s12, %s10
  $region1: #{ramnet_forward.1} parent=0
    #allocation2 [shape = 'u8[65536]{0}', space=vmem, size = 0x10000, scoped, tag = 'input window, operand 1, single buffered']
    #allocation3 [shape = 's32[2]{0}', space=sflag, size = 0x8, scoped, tag = 'scoped memory for ramnet_forward.1']
    #allocation4 [shape = 'u8[65536]{0}', space=vmem, size = 0x10000, scoped, tag = 'input window, operand 3, single buffered']
    #allocation5 [shape = 's32[1]{0}', space=sflag, size = 0x4, scoped, tag = 'scoped memory for ramnet_forward.1']
    %14 = vsyncpa [#allocation3], 0
    %15 = vsyncpa [#allocation5], 0
    loop: start=0, step=1, limit=4
    $region2: #{ramnet_forward.1} parent=1 // loop_pre_header
      _
    $region3: #{ramnet_forward.1} parent=1 // loop_header
      %s17 = sphi 0, %s21
      %p18 = scmp.ge.s32.totalorder %s17, 4
      %s27 = sphi 0, %s29
      %s30 = sphi 0, %s27
      %s31 = sphi 0, %s30
      %s47 = sphi 0, %s31
      %s51 = sphi 0, %s51
      %s53 = sphi 0, %s51
      %s54 = sphi 0, %s53
      %s68 = sphi 0, %s54
      %s72 = sphi 0, %s72
      %s74 = sphi 0, %s72
      %s75 = sphi 0, %s74
      %s89 = sphi 0, %s75
      %s93 = sphi 0, %s93
      %s95 = sphi 0, %s93
      %s96 = sphi 0, %s95
      %s110 = sphi 0, %s96
      %s114 = sphi 0, %s114
      %s116 = sphi 0, %s114
      %s117 = sphi 0, %s116
      %s131 = sphi 0, %s117
      %s135 = sphi 0, %s135
      %s137 = sphi 0, %s135
      %s138 = sphi 0, %s137
      %s152 = sphi 0, %s138
      %s156 = sphi 0, %s156
      %s158 = sphi 0, %s156
      %s159 = sphi 0, %s158
      %s173 = sphi 0, %s159
      %s177 = sphi 0, %s177
      %s179 = sphi 0, %s177
      %s180 = sphi 0, %s179
      %s194 = sphi 0, %s180
      %s198 = sphi 0, %s198
      %s200 = sphi 0, %s198
      %s201 = sphi 0, %s200
      %s215 = sphi 0, %s201
      %s221 = sphi 0, %s223
      %s224 = sphi 0, %s221
      %s225 = sphi 0, %s224
      %s241 = sphi 0, %s225
    $region4: #{ramnet_forward.1} parent=1 // loop_header_branch
      %20 = sbr.rel (%p18) target = $region8
    $region5: #{ramnet_forward.1} parent=1 // loop_body
      %s22 = ssub.s32 %s17, 1
      %s23 = ssub.s32 %s17, 2
      %s24 = sadd.s32 %s17, 1
      %s25 = ssub.s32 %s17, %s24
      %p26 = scmp.eq.s32.totalorder %s25, 0
      %s28 = sadd.s32 %s27, 1
      %s29 = scalar_select %p26, %s27, %s28
      %p32 = pneg %p26
      %p33 = scmp.eq.s32.totalorder %s17, 1
      %p34 = por %p32, %p33
      %p35 = scmp.ne.s32.totalorder %s27, %s30
      %p36 = scmp.eq.s32.totalorder %s17, 0
      %p37 = por %p35, %p36
      %p38 = scmp.ne.s32.totalorder %s27, %s30
      %p39 = scmp.eq.s32.totalorder %s22, 1
      %p40 = por %p38, %p39
      %p41 = scmp.ne.s32.totalorder %s30, %s31
      %p42 = scmp.eq.s32.totalorder %s22, 0
      %p43 = por %p41, %p42
      %p44 = scmp.ne.s32.totalorder %s30, %s31
      %p45 = scmp.eq.s32.totalorder %s23, 1
      %p46 = por %p44, %p45
      %p48 = scmp.ne.s32.totalorder %s31, %s47
      %p49 = scmp.eq.s32.totalorder %s23, 0
      %p50 = por %p48, %p49
      %s52 = sadd.s32 %s51, 1
      %p55 = scmp.eq.s32.totalorder %s17, 1
      %p56 = scmp.ne.s32.totalorder %s51, %s53
      %p57 = scmp.eq.s32.totalorder %s17, 0
      %p58 = por %p56, %p57
      %p59 = scmp.ne.s32.totalorder %s51, %s53
      %p60 = scmp.eq.s32.totalorder %s22, 1
      %p61 = por %p59, %p60
      %p62 = scmp.ne.s32.totalorder %s53, %s54
      %p63 = scmp.eq.s32.totalorder %s22, 0
      %p64 = por %p62, %p63
      %p65 = scmp.ne.s32.totalorder %s53, %s54
      %p66 = scmp.eq.s32.totalorder %s23, 1
      %p67 = por %p65, %p66
      %p69 = scmp.ne.s32.totalorder %s54, %s68
      %p70 = scmp.eq.s32.totalorder %s23, 0
      %p71 = por %p69, %p70
      %s73 = sadd.s32 %s72, 1
      %p76 = scmp.eq.s32.totalorder %s17, 1
      %p77 = scmp.ne.s32.totalorder %s72, %s74
      %p78 = scmp.eq.s32.totalorder %s17, 0
      %p79 = por %p77, %p78
      %p80 = scmp.ne.s32.totalorder %s72, %s74
      %p81 = scmp.eq.s32.totalorder %s22, 1
      %p82 = por %p80, %p81
      %p83 = scmp.ne.s32.totalorder %s74, %s75
      %p84 = scmp.eq.s32.totalorder %s22, 0
      %p85 = por %p83, %p84
      %p86 = scmp.ne.s32.totalorder %s74, %s75
      %p87 = scmp.eq.s32.totalorder %s23, 1
      %p88 = por %p86, %p87
      %p90 = scmp.ne.s32.totalorder %s75, %s89
      %p91 = scmp.eq.s32.totalorder %s23, 0
      %p92 = por %p90, %p91
      %s94 = sadd.s32 %s93, 1
      %p97 = scmp.eq.s32.totalorder %s17, 1
      %p98 = scmp.ne.s32.totalorder %s93, %s95
      %p99 = scmp.eq.s32.totalorder %s17, 0
      %p100 = por %p98, %p99
      %p101 = scmp.ne.s32.totalorder %s93, %s95
      %p102 = scmp.eq.s32.totalorder %s22, 1
      %p103 = por %p101, %p102
      %p104 = scmp.ne.s32.totalorder %s95, %s96
      %p105 = scmp.eq.s32.totalorder %s22, 0
      %p106 = por %p104, %p105
      %p107 = scmp.ne.s32.totalorder %s95, %s96
      %p108 = scmp.eq.s32.totalorder %s23, 1
      %p109 = por %p107, %p108
      %p111 = scmp.ne.s32.totalorder %s96, %s110
      %p112 = scmp.eq.s32.totalorder %s23, 0
      %p113 = por %p111, %p112
      %s115 = sadd.s32 %s114, 1
      %p118 = scmp.eq.s32.totalorder %s17, 1
      %p119 = scmp.ne.s32.totalorder %s114, %s116
      %p120 = scmp.eq.s32.totalorder %s17, 0
      %p121 = por %p119, %p120
      %p122 = scmp.ne.s32.totalorder %s114, %s116
      %p123 = scmp.eq.s32.totalorder %s22, 1
      %p124 = por %p122, %p123
      %p125 = scmp.ne.s32.totalorder %s116, %s117
      %p126 = scmp.eq.s32.totalorder %s22, 0
      %p127 = por %p125, %p126
      %p128 = scmp.ne.s32.totalorder %s116, %s117
      %p129 = scmp.eq.s32.totalorder %s23, 1
      %p130 = por %p128, %p129
      %p132 = scmp.ne.s32.totalorder %s117, %s131
      %p133 = scmp.eq.s32.totalorder %s23, 0
      %p134 = por %p132, %p133
      %s136 = sadd.s32 %s135, 1
      %p139 = scmp.eq.s32.totalorder %s17, 1
      %p140 = scmp.ne.s32.totalorder %s135, %s137
      %p141 = scmp.eq.s32.totalorder %s17, 0
      %p142 = por %p140, %p141
      %p143 = scmp.ne.s32.totalorder %s135, %s137
      %p144 = scmp.eq.s32.totalorder %s22, 1
      %p145 = por %p143, %p144
      %p146 = scmp.ne.s32.totalorder %s137, %s138
      %p147 = scmp.eq.s32.totalorder %s22, 0
      %p148 = por %p146, %p147
      %p149 = scmp.ne.s32.totalorder %s137, %s138
      %p150 = scmp.eq.s32.totalorder %s23, 1
      %p151 = por %p149, %p150
      %p153 = scmp.ne.s32.totalorder %s138, %s152
      %p154 = scmp.eq.s32.totalorder %s23, 0
      %p155 = por %p153, %p154
      %s157 = sadd.s32 %s156, 1
      %p160 = scmp.eq.s32.totalorder %s17, 1
      %p161 = scmp.ne.s32.totalorder %s156, %s158
      %p162 = scmp.eq.s32.totalorder %s17, 0
      %p163 = por %p161, %p162
      %p164 = scmp.ne.s32.totalorder %s156, %s158
      %p165 = scmp.eq.s32.totalorder %s22, 1
      %p166 = por %p164, %p165
      %p167 = scmp.ne.s32.totalorder %s158, %s159
      %p168 = scmp.eq.s32.totalorder %s22, 0
      %p169 = por %p167, %p168
      %p170 = scmp.ne.s32.totalorder %s158, %s159
      %p171 = scmp.eq.s32.totalorder %s23, 1
      %p172 = por %p170, %p171
      %p174 = scmp.ne.s32.totalorder %s159, %s173
      %p175 = scmp.eq.s32.totalorder %s23, 0
      %p176 = por %p174, %p175
      %s178 = sadd.s32 %s177, 1
      %p181 = scmp.eq.s32.totalorder %s17, 1
      %p182 = scmp.ne.s32.totalorder %s177, %s179
      %p183 = scmp.eq.s32.totalorder %s17, 0
      %p184 = por %p182, %p183
      %p185 = scmp.ne.s32.totalorder %s177, %s179
      %p186 = scmp.eq.s32.totalorder %s22, 1
      %p187 = por %p185, %p186
      %p188 = scmp.ne.s32.totalorder %s179, %s180
      %p189 = scmp.eq.s32.totalorder %s22, 0
      %p190 = por %p188, %p189
      %p191 = scmp.ne.s32.totalorder %s179, %s180
      %p192 = scmp.eq.s32.totalorder %s23, 1
      %p193 = por %p191, %p192
      %p195 = scmp.ne.s32.totalorder %s180, %s194
      %p196 = scmp.eq.s32.totalorder %s23, 0
      %p197 = por %p195, %p196
      %s199 = sadd.s32 %s198, 1
      %p202 = scmp.eq.s32.totalorder %s17, 1
      %p203 = scmp.ne.s32.totalorder %s198, %s200
      %p204 = scmp.eq.s32.totalorder %s17, 0
      %p205 = por %p203, %p204
      %p206 = scmp.ne.s32.totalorder %s198, %s200
      %p207 = scmp.eq.s32.totalorder %s22, 1
      %p208 = por %p206, %p207
      %p209 = scmp.ne.s32.totalorder %s200, %s201
      %p210 = scmp.eq.s32.totalorder %s22, 0
      %p211 = por %p209, %p210
      %p212 = scmp.ne.s32.totalorder %s200, %s201
      %p213 = scmp.eq.s32.totalorder %s23, 1
      %p214 = por %p212, %p213
      %p216 = scmp.ne.s32.totalorder %s201, %s215
      %p217 = scmp.eq.s32.totalorder %s23, 0
      %p218 = por %p216, %p217
      %s219 = ssub.s32 %s17, %s24
      %p220 = scmp.eq.s32.totalorder %s219, 0
      %s222 = sadd.s32 %s221, 1
      %s223 = scalar_select %p220, %s221, %s222
      %p226 = pneg %p220
      %p227 = scmp.eq.s32.totalorder %s17, 1
      %p228 = por %p226, %p227
      %p229 = scmp.ne.s32.totalorder %s221, %s224
      %p230 = scmp.eq.s32.totalorder %s17, 0
      %p231 = por %p229, %p230
      %p232 = scmp.ne.s32.totalorder %s221, %s224
      %p233 = scmp.eq.s32.totalorder %s22, 1
      %p234 = por %p232, %p233
      %p235 = scmp.ne.s32.totalorder %s224, %s225
      %p236 = scmp.eq.s32.totalorder %s22, 0
      %p237 = por %p235, %p236
      %p238 = scmp.ne.s32.totalorder %s224, %s225
      %p239 = scmp.eq.s32.totalorder %s23, 1
      %p240 = por %p238, %p239
      %p242 = scmp.ne.s32.totalorder %s225, %s241
      %p243 = scmp.eq.s32.totalorder %s23, 0
      %p244 = por %p242, %p243
      %p245 = scmp.le.s32.totalorder 1, %s17
      %p246 = scmp.lt.s32.totalorder %s17, 3
      %p247 = pnand %p245, %p246
      %p248 = pneg %p247
      // Predicated region
      $region9: #{ramnet_forward.1} parent=5 // pred_check
        _
      $region10: #{ramnet_forward.1} parent=5 // pred_check_branch
        %250 = sbr.rel (%p247) target = $region12
      $region11: #{ramnet_forward.1} parent=5 // pred_region
        %s251 = ssub.s32 %s17, 1
        // Predicated region
        $region13: #{ramnet_forward.1} parent=11 // pred_check
          %p252 = pneg %p64
        $region14: #{ramnet_forward.1} parent=11 // pred_check_branch
          %254 = sbr.rel (%p252) target = $region16
        $region15: #{ramnet_forward.1} parent=11 // pred_region
          %s256 = ssub.s32 2048, 2048
          %257 = vsyncadd [#allocation3], %s256
          %s258 = sshll.u32 [#allocation2], 4
          %s259 = int_to_ptr.vmem [resolvable:$true] %s258
          %264 = dma.hbm_to_vmem [thread:$0]  %s1, 2048, %s259, [#allocation3], 128, 128, 8
        $region16: #{ramnet_forward.1} parent=11 // pred_fallthru
          _
        // Predicated region
        $region17: #{ramnet_forward.1} parent=11 // pred_check
          %p265 = pneg %p85
        $region18: #{ramnet_forward.1} parent=11 // pred_check_branch
          %267 = sbr.rel (%p265) target = $region20
        $region19: #{ramnet_forward.1} parent=11 // pred_region
          _
        $region20: #{ramnet_forward.1} parent=11 // pred_fallthru
          _
        // Predicated region
        $region21: #{ramnet_forward.1} parent=11 // pred_check
          %p268 = pneg %p106
        $region22: #{ramnet_forward.1} parent=11 // pred_check_branch
          %270 = sbr.rel (%p268) target = $region24
        $region23: #{ramnet_forward.1} parent=11 // pred_region
          %s272 = ssub.s32 2048, 2048
          %273 = vsyncadd [#allocation5], %s272
          %s274 = sshll.u32 [#allocation4], 4
          %s275 = int_to_ptr.vmem [resolvable:$true] %s274
          %280 = dma.hbm_to_vmem [thread:$0]  %s3, 2048, %s275, [#allocation5], 64, 64, 4
        $region24: #{ramnet_forward.1} parent=11 // pred_fallthru
          _
        // Predicated region
        $region25: #{ramnet_forward.1} parent=11 // pred_check
          %p281 = pneg %p127
        $region26: #{ramnet_forward.1} parent=11 // pred_check_branch
          %283 = sbr.rel (%p281) target = $region28
        $region27: #{ramnet_forward.1} parent=11 // pred_region
          _
        $region28: #{ramnet_forward.1} parent=11 // pred_fallthru
          _
        // Predicated region
        $region29: #{ramnet_forward.1} parent=11 // pred_check
          %p284 = pneg %p148
        $region30: #{ramnet_forward.1} parent=11 // pred_check_branch
          %286 = sbr.rel (%p284) target = $region32
        $region31: #{ramnet_forward.1} parent=11 // pred_region
          _
        $region32: #{ramnet_forward.1} parent=11 // pred_fallthru
          _
        // Predicated region
        $region33: #{ramnet_forward.1} parent=11 // pred_check
          %p287 = pneg %p169
        $region34: #{ramnet_forward.1} parent=11 // pred_check_branch
          %289 = sbr.rel (%p287) target = $region36
        $region35: #{ramnet_forward.1} parent=11 // pred_region
          _
        $region36: #{ramnet_forward.1} parent=11 // pred_fallthru
          _
        // Predicated region
        $region37: #{ramnet_forward.1} parent=11 // pred_check
          %p290 = pneg %p190
        $region38: #{ramnet_forward.1} parent=11 // pred_check_branch
          %292 = sbr.rel (%p290) target = $region40
        $region39: #{ramnet_forward.1} parent=11 // pred_region
          _
        $region40: #{ramnet_forward.1} parent=11 // pred_fallthru
          _
        // Predicated region
        $region41: #{ramnet_forward.1} parent=11 // pred_check
          %p293 = pneg %p211
        $region42: #{ramnet_forward.1} parent=11 // pred_check_branch
          %295 = sbr.rel (%p293) target = $region44
        $region43: #{ramnet_forward.1} parent=11 // pred_region
          _
        $region44: #{ramnet_forward.1} parent=11 // pred_fallthru
          _
      $region12: #{ramnet_forward.1} parent=5 // pred_fallthru
        _
      %p296 = scmp.lt.s32.totalorder %s17, 2
      // Predicated region
      $region45: #{ramnet_forward.1} parent=5 // pred_check
        %p297 = pneg %p296
      $region46: #{ramnet_forward.1} parent=5 // pred_check_branch
        %299 = sbr.rel (%p297) target = $region48
      $region47: #{ramnet_forward.1} parent=5 // pred_region
        // Predicated region
        $region49: #{ramnet_forward.1} parent=47 // pred_check
          %p300 = pneg %p37
        $region50: #{ramnet_forward.1} parent=47 // pred_check_branch
          %302 = sbr.rel (%p300) target = $region52
        $region51: #{ramnet_forward.1} parent=47 // pred_region
          %s303 = smul.u32 4, %s17
          %p304 = scmp.lt.s32.totalorder %s303, 7
          %s305 = scalar_select %p304, %s303, 7
          %s306 = smul.addr %s305, 4
          %s307 = scalar_lea.vmem %s0, %s306
          %s308 = smul.u32 4, %s17
        $region52: #{ramnet_forward.1} parent=47 // pred_fallthru
          _
      $region48: #{ramnet_forward.1} parent=5 // pred_fallthru
        _
      %p309 = scmp.le.s32.totalorder 1, %s17
      %p310 = scmp.lt.s32.totalorder %s17, 3
      %p311 = pnand %p309, %p310
      %p312 = pneg %p311
      // Predicated region
      $region53: #{ramnet_forward.1} parent=5 // pred_check
        _
      $region54: #{ramnet_forward.1} parent=5 // pred_check_branch
        %314 = sbr.rel (%p311) target = $region56
      $region55: #{ramnet_forward.1} parent=5 // pred_region
        %s315 = ssub.s32 %s17, 1
        // Predicated region
        $region57: #{ramnet_forward.1} parent=55 // pred_check
          %p316 = pneg %p64
        $region58: #{ramnet_forward.1} parent=55 // pred_check_branch
          %318 = sbr.rel (%p316) target = $region60
        $region59: #{ramnet_forward.1} parent=55 // pred_region
          %319 = dma.done [#allocation3], 2048
        $region60: #{ramnet_forward.1} parent=55 // pred_fallthru
          _
        // Predicated region
        $region61: #{ramnet_forward.1} parent=55 // pred_check
          %p320 = pneg %p106
        $region62: #{ramnet_forward.1} parent=55 // pred_check_branch
          %322 = sbr.rel (%p320) target = $region64
        $region63: #{ramnet_forward.1} parent=55 // pred_region
          %323 = dma.done [#allocation5], 2048
        $region64: #{ramnet_forward.1} parent=55 // pred_fallthru
          _
        %s324 = smul.u32 4, %s22
        %p325 = scmp.lt.s32.totalorder %s324, 7
        %s326 = scalar_select %p325, %s324, 7
        %s327 = smul.addr %s326, 4
        %s328 = scalar_lea.vmem %s0, %s327
        %p329 = pneg %p43
        %p330 = pneg %p40
        %p331 = pneg %p64
        %p332 = pneg %p61
        %p333 = pneg %p85
        %p334 = pneg %p82
        %p335 = pneg %p106
        %p336 = pneg %p103
        %p337 = pneg %p127
        %p338 = pneg %p124
        %p339 = pneg %p148
        %p340 = pneg %p145
        %p341 = pneg %p169
        %p342 = pneg %p166
        %p343 = pneg %p190
        %p344 = pneg %p187
        %p345 = pneg %p211
        %p346 = pneg %p208
        %p347 = pneg %p237
        %p348 = pneg %p234
        %s349 = smul.u32 4, %s22
        %p350 = scmp.lt.s32.totalorder %s349, 7
        %s351 = scalar_select %p350, %s349, 7
        %s352 = smul.addr %s351, 4
        %s353 = scalar_lea.vmem %s9, %s352
        %s354 = smul.u32 4, %s22
        %p355 = scmp.lt.s32.totalorder %s354, 7
        %s356 = scalar_select %p355, %s354, 7
        %s357 = smul.addr %s356, 4
        %s358 = scalar_lea.vmem %s0, %s357
        %s359 = smul.u32 4, %s22
        %s360 = smul.u32 4, %s22
        %p361 = scmp.lt.s32.totalorder %s360, 7
        %s362 = scalar_select %p361, %s360, 7
        %s363 = smul.addr %s362, 4
        %s364 = scalar_lea.vmem %s9, %s363
        %s365 = smul.u32 4, %s22
        %v367 = vld [vmem:[%s358] sm:$0xf]
        %v368 = vld [vmem:[%s358 + $0x4] sm:$0xf]
        %v369 = vld [vmem:[%s358 + $0x8] sm:$0xf]
        %v370 = vld [vmem:[%s358 + $0xc] sm:$0xf]
        %v371 = vld [vmem:[#allocation2] sm:$0xff]
        %v372 = vld [vmem:[#allocation2 + $0x8] sm:$0xff]
        %v373 = vld [vmem:[#allocation2 + $0x10] sm:$0xff]
        %v374 = vld [vmem:[#allocation2 + $0x18] sm:$0xff]
        %v375 = vld [vmem:[#allocation2 + $0x20] sm:$0xff]
        %v376 = vld [vmem:[#allocation2 + $0x28] sm:$0xff]
        %v377 = vld [vmem:[#allocation2 + $0x30] sm:$0xff]
        %v378 = vld [vmem:[#allocation2 + $0x38] sm:$0xff]
        %v379 = vld [vmem:[#allocation2 + $0x40] sm:$0xff]
        %v380 = vld [vmem:[#allocation2 + $0x48] sm:$0xff]
        %v381 = vld [vmem:[#allocation2 + $0x50] sm:$0xff]
        %v382 = vld [vmem:[#allocation2 + $0x58] sm:$0xff]
        %v383 = vld [vmem:[#allocation2 + $0x60] sm:$0xff]
        %v384 = vld [vmem:[#allocation2 + $0x68] sm:$0xff]
        %v385 = vld [vmem:[#allocation2 + $0x70] sm:$0xff]
        %v386 = vld [vmem:[#allocation2 + $0x78] sm:$0xff]
        %v391 = vunpack.c.l.b16 %v367
        %v392 = vunpack.c.l.b16 %v368
        %v393 = vunpack.c.l.b16 %v369
        %v394 = vunpack.c.l.b16 %v370
        %v395 = vpack.c.b16 %v392, %v391
        %v396 = vpack.c.b16 %v394, %v393
        %v415 = vunpack.c.l.b16 %v371
        %v416 = vunpack.c.h.b16 %v371
        %v417 = vunpack.c.l.b16 %v372
        %v418 = vunpack.c.h.b16 %v372
        %v419 = vunpack.c.l.b16 %v373
        %v420 = vunpack.c.h.b16 %v373
        %v421 = vunpack.c.l.b16 %v374
        %v422 = vunpack.c.h.b16 %v374
        %v423 = vunpack.c.l.b16 %v375
        %v424 = vunpack.c.h.b16 %v375
        %v425 = vunpack.c.l.b16 %v376
        %v426 = vunpack.c.h.b16 %v376
        %v427 = vunpack.c.l.b16 %v377
        %v428 = vunpack.c.h.b16 %v377
        %v429 = vunpack.c.l.b16 %v378
        %v430 = vunpack.c.h.b16 %v378
        %v431 = vunpack.c.l.b16 %v379
        %v432 = vunpack.c.h.b16 %v379
        %v433 = vunpack.c.l.b16 %v380
        %v434 = vunpack.c.h.b16 %v380
        %v435 = vunpack.c.l.b16 %v381
        %v436 = vunpack.c.h.b16 %v381
        %v437 = vunpack.c.l.b16 %v382
        %v438 = vunpack.c.h.b16 %v382
        %v439 = vunpack.c.l.b16 %v383
        %v440 = vunpack.c.h.b16 %v383
        %v441 = vunpack.c.l.b16 %v384
        %v442 = vunpack.c.h.b16 %v384
        %v443 = vunpack.c.l.b16 %v385
        %v444 = vunpack.c.h.b16 %v385
        %v445 = vunpack.c.l.b16 %v386
        %v446 = vunpack.c.h.b16 %v386
        %v447 = vpack.c.b16 %v417, %v415
        %v448 = vpack.c.b16 %v418, %v416
        %v449 = vpack.c.b16 %v421, %v419
        %v450 = vpack.c.b16 %v422, %v420
        %v451 = vpack.c.b16 %v425, %v423
        %v452 = vpack.c.b16 %v426, %v424
        %v453 = vpack.c.b16 %v429, %v427
        %v454 = vpack.c.b16 %v430, %v428
        %v455 = vpack.c.b16 %v433, %v431
        %v456 = vpack.c.b16 %v434, %v432
        %v457 = vpack.c.b16 %v437, %v435
        %v458 = vpack.c.b16 %v438, %v436
        %v459 = vpack.c.b16 %v441, %v439
        %v460 = vpack.c.b16 %v442, %v440
        %v461 = vpack.c.b16 %v445, %v443
        %v462 = vpack.c.b16 %v446, %v444
        %479 = vmatprep.subr.bf16.mxu0 %v448
        %480 = vmatpush1.bf16.msra.mxu0 %v447
        %481 = vmatprep.subr.bf16.mxu0 %v450
        %482 = vmatpush1.bf16.msra.mxu0 %v449
        %483 = vmatprep.subr.bf16.mxu0 %v452
        %484 = vmatpush1.bf16.msra.mxu0 %v451
        %485 = vmatprep.subr.bf16.mxu0 %v454
        %486 = vmatpush1.bf16.msra.mxu0 %v453
        %487 = vmatprep.subr.bf16.mxu0 %v456
        %488 = vmatpush1.bf16.msra.mxu0 %v455
        %489 = vmatprep.subr.bf16.mxu0 %v458
        %490 = vmatpush1.bf16.msra.mxu0 %v457
        %491 = vmatprep.subr.bf16.mxu0 %v460
        %492 = vmatpush1.bf16.msra.mxu0 %v459
        %493 = vmatprep.subr.bf16.mxu0 %v462
        %494 = vmatpush1.bf16.msra.mxu0 %v461
        %495 = vmatprep.subr.bf16.mxu0 0
        %496 = vmatpush1.bf16.msra.mxu0 0
        %497 = vmatprep.subr.bf16.mxu0 0
        %498 = vmatpush1.bf16.msra.mxu0 0
        %499 = vmatprep.subr.bf16.mxu0 0
        %500 = vmatpush1.bf16.msra.mxu0 0
        %501 = vmatprep.subr.bf16.mxu0 0
        %502 = vmatpush1.bf16.msra.mxu0 0
        %503 = vmatprep.subr.bf16.mxu0 0
        %504 = vmatpush1.bf16.msra.mxu0 0
        %505 = vmatprep.subr.bf16.mxu0 0
        %506 = vmatpush1.bf16.msra.mxu0 0
        %507 = vmatprep.subr.bf16.mxu0 0
        %508 = vmatpush1.bf16.msra.mxu0 0
        %509 = vmatprep.subr.bf16.mxu0 0
        %510 = vmatpush1.bf16.msra.mxu0 0
        %511 = vmatprep.mubr.bf16.mxu0 0
        %512 = vmatmul.mubr.bf16.gmra.mrb[0].mxu0 %v395
        %v513 = vpop.f32.mrb[0].mxu0
        %v514 = vadd.f32 0.0, %v513
        %v515 = vpop.f32.mrb[0].mxu0
        %v516 = vadd.f32 0.0, %v515
        %v517 = vpop.f32.mrb[0].mxu0
        %v518 = vadd.f32 0.0, %v517
        %v519 = vpop.f32.mrb[0].mxu0
        %v520 = vadd.f32 0.0, %v519
        %521 = vmatprep.mubr.bf16.mxu0 0
        %522 = vmatmul.mubr.bf16.gmra.mrb[0].mxu0 %v396
        %v523 = vpop.f32.mrb[0].mxu0
        %v524 = vadd.f32 0.0, %v523
        %v525 = vpop.f32.mrb[0].mxu0
        %v526 = vadd.f32 0.0, %v525
        %v527 = vpop.f32.mrb[0].mxu0
        %v528 = vadd.f32 0.0, %v527
        %v529 = vpop.f32.mrb[0].mxu0
        %v530 = vadd.f32 0.0, %v529
        %531 = vdwg.mxu0
        %v532 = vpack.c.bf16 %v518, %v514
        %v533 = vpack.c.bf16 %v520, %v516
        %v534 = vpack.c.bf16 %v528, %v524
        %v535 = vpack.c.bf16 %v530, %v526
        %v536 = vld [vmem:[%s2] sm:$0x3]
        %v539 = vunpack.c.l.s4 1966171168
        %v540 = vunpack.c.0.s8 %v539
        %v541 = vlaneseq
        %v542 = vshrl.u32 %v541, 7
        %v543 = vsub.s32 %v540, %v542
        %v544 = vrot.slane %v536, %v543
        %v545 = vcombine.high %v544, %v544
        %v547 = vunpack.c.l.s4 1966171168
        %v548 = vunpack.c.0.s8 %v547
        %v549 = vlaneseq
        %v550 = vshrl.u32 %v549, 7
        %v551 = vsub.s32 %v548, %v550
        %v552 = vrot.slane %v544, %v551
        %v554 = vunpack.c.l.s4 1966171168
        %v555 = vunpack.c.0.s8 %v554
        %v556 = vlaneseq
        %v557 = vshrl.u32 %v556, 7
        %v558 = vsub.s32 %v555, %v557
        %v559 = vrot.slane %v545, %v558
        %v561 = vpack.i.b16 %v552, %v552
        %v563 = vlaneseq
        %v564 = vshrl.u32 %v563, 7
        %v565 = vsub.s32 0, %v564
        %v566 = vrot.slane %v561, %v565
        %v568 = vpack.i.b16 %v559, %v559
        %v570 = vlaneseq
        %v571 = vshrl.u32 %v570, 7
        %v572 = vsub.s32 0, %v571
        %v573 = vrot.slane %v568, %v572
        %v574 = vadd.bf16 %v532, %v566
        %v575 = vadd.bf16 %v533, %v573
        %v576 = vadd.bf16 %v534, %v566
        %v577 = vadd.bf16 %v535, %v573
        %v578 = vmax.bf16 %v574, 0
        %v579 = vmax.bf16 %v575, 0
        %v580 = vmax.bf16 %v576, 0
        %v581 = vmax.bf16 %v577, 0
        %v582 = vld [vmem:[#allocation4] sm:$0xf]
        %v583 = vld [vmem:[#allocation4 + $0x4] sm:$0xf]
        %v584 = vld [vmem:[#allocation4 + $0x8] sm:$0xf]
        %v585 = vld [vmem:[#allocation4 + $0xc] sm:$0xf]
        %v586 = vld [vmem:[#allocation4 + $0x10] sm:$0xf]
        %v587 = vld [vmem:[#allocation4 + $0x14] sm:$0xf]
        %v588 = vld [vmem:[#allocation4 + $0x18] sm:$0xf]
        %v589 = vld [vmem:[#allocation4 + $0x1c] sm:$0xf]
        %v590 = vld [vmem:[#allocation4 + $0x20] sm:$0xf]
        %v591 = vld [vmem:[#allocation4 + $0x24] sm:$0xf]
        %v592 = vld [vmem:[#allocation4 + $0x28] sm:$0xf]
        %v593 = vld [vmem:[#allocation4 + $0x2c] sm:$0xf]
        %v594 = vld [vmem:[#allocation4 + $0x30] sm:$0xf]
        %v595 = vld [vmem:[#allocation4 + $0x34] sm:$0xf]
        %v596 = vld [vmem:[#allocation4 + $0x38] sm:$0xf]
        %v597 = vld [vmem:[#allocation4 + $0x3c] sm:$0xf]
        %v598 = vld [vmem:[#allocation4 + $0x40] sm:$0xf]
        %v599 = vld [vmem:[#allocation4 + $0x44] sm:$0xf]
        %v600 = vld [vmem:[#allocation4 + $0x48] sm:$0xf]
        %v601 = vld [vmem:[#allocation4 + $0x4c] sm:$0xf]
        %v602 = vld [vmem:[#allocation4 + $0x50] sm:$0xf]
        %v603 = vld [vmem:[#allocation4 + $0x54] sm:$0xf]
        %v604 = vld [vmem:[#allocation4 + $0x58] sm:$0xf]
        %v605 = vld [vmem:[#allocation4 + $0x5c] sm:$0xf]
        %v606 = vld [vmem:[#allocation4 + $0x60] sm:$0xf]
        %v607 = vld [vmem:[#allocation4 + $0x64] sm:$0xf]
        %v608 = vld [vmem:[#allocation4 + $0x68] sm:$0xf]
        %v609 = vld [vmem:[#allocation4 + $0x6c] sm:$0xf]
        %v610 = vld [vmem:[#allocation4 + $0x70] sm:$0xf]
        %v611 = vld [vmem:[#allocation4 + $0x74] sm:$0xf]
        %v612 = vld [vmem:[#allocation4 + $0x78] sm:$0xf]
        %v613 = vld [vmem:[#allocation4 + $0x7c] sm:$0xf]
        %v646 = vunpack.c.l.b16 %v582
        %v647 = vunpack.c.l.b16 %v583
        %v648 = vunpack.c.l.b16 %v584
        %v649 = vunpack.c.l.b16 %v585
        %v650 = vunpack.c.l.b16 %v586
        %v651 = vunpack.c.l.b16 %v587
        %v652 = vunpack.c.l.b16 %v588
        %v653 = vunpack.c.l.b16 %v589
        %v654 = vunpack.c.l.b16 %v590
        %v655 = vunpack.c.l.b16 %v591
        %v656 = vunpack.c.l.b16 %v592
        %v657 = vunpack.c.l.b16 %v593
        %v658 = vunpack.c.l.b16 %v594
        %v659 = vunpack.c.l.b16 %v595
        %v660 = vunpack.c.l.b16 %v596
        %v661 = vunpack.c.l.b16 %v597
        %v662 = vunpack.c.l.b16 %v598
        %v663 = vunpack.c.l.b16 %v599
        %v664 = vunpack.c.l.b16 %v600
        %v665 = vunpack.c.l.b16 %v601
        %v666 = vunpack.c.l.b16 %v602
        %v667 = vunpack.c.l.b16 %v603
        %v668 = vunpack.c.l.b16 %v604
        %v669 = vunpack.c.l.b16 %v605
        %v670 = vunpack.c.l.b16 %v606
        %v671 = vunpack.c.l.b16 %v607
        %v672 = vunpack.c.l.b16 %v608
        %v673 = vunpack.c.l.b16 %v609
        %v674 = vunpack.c.l.b16 %v610
        %v675 = vunpack.c.l.b16 %v611
        %v676 = vunpack.c.l.b16 %v612
        %v677 = vunpack.c.l.b16 %v613
        %v678 = vpack.c.b16 %v647, %v646
        %v679 = vpack.c.b16 %v649, %v648
        %v680 = vpack.c.b16 %v651, %v650
        %v681 = vpack.c.b16 %v653, %v652
        %v682 = vpack.c.b16 %v655, %v654
        %v683 = vpack.c.b16 %v657, %v656
        %v684 = vpack.c.b16 %v659, %v658
        %v685 = vpack.c.b16 %v661, %v660
        %v686 = vpack.c.b16 %v663, %v662
        %v687 = vpack.c.b16 %v665, %v664
        %v688 = vpack.c.b16 %v667, %v666
        %v689 = vpack.c.b16 %v669, %v668
        %v690 = vpack.c.b16 %v671, %v670
        %v691 = vpack.c.b16 %v673, %v672
        %v692 = vpack.c.b16 %v675, %v674
        %v693 = vpack.c.b16 %v677, %v676
        %710 = vmatprep.subr.bf16.mxu0 0
        %711 = vmatpush1.bf16.msra.mxu0 %v678
        %712 = vmatprep.subr.bf16.mxu0 0
        %713 = vmatpush1.bf16.msra.mxu0 %v679
        %714 = vmatprep.subr.bf16.mxu0 0
        %715 = vmatpush1.bf16.msra.mxu0 %v680
        %716 = vmatprep.subr.bf16.mxu0 0
        %717 = vmatpush1.bf16.msra.mxu0 %v681
        %718 = vmatprep.subr.bf16.mxu0 0
        %719 = vmatpush1.bf16.msra.mxu0 %v682
        %720 = vmatprep.subr.bf16.mxu0 0
        %721 = vmatpush1.bf16.msra.mxu0 %v683
        %722 = vmatprep.subr.bf16.mxu0 0
        %723 = vmatpush1.bf16.msra.mxu0 %v684
        %724 = vmatprep.subr.bf16.mxu0 0
        %725 = vmatpush1.bf16.msra.mxu0 %v685
        %726 = vmatprep.subr.bf16.mxu0 0
        %727 = vmatpush1.bf16.msra.mxu0 %v686
        %728 = vmatprep.subr.bf16.mxu0 0
        %729 = vmatpush1.bf16.msra.mxu0 %v687
        %730 = vmatprep.subr.bf16.mxu0 0
        %731 = vmatpush1.bf16.msra.mxu0 %v688
        %732 = vmatprep.subr.bf16.mxu0 0
        %733 = vmatpush1.bf16.msra.mxu0 %v689
        %734 = vmatprep.subr.bf16.mxu0 0
        %735 = vmatpush1.bf16.msra.mxu0 %v690
        %736 = vmatprep.subr.bf16.mxu0 0
        %737 = vmatpush1.bf16.msra.mxu0 %v691
        %738 = vmatprep.subr.bf16.mxu0 0
        %739 = vmatpush1.bf16.msra.mxu0 %v692
        %740 = vmatprep.subr.bf16.mxu0 0
        %741 = vmatpush1.bf16.msra.mxu0 %v693
        %742 = vmatprep.mubr.bf16.mxu0 %v579
        %743 = vmatmul.mubr.bf16.gmra.mrb[0].mxu0 %v578
        %v744 = vpop.f32.mrb[0].mxu0
        %v745 = vadd.f32 0.0, %v744
        %v746 = vpop.f32.mrb[0].mxu0
        %v747 = vpop.f32.mrb[0].mxu0
        %v748 = vadd.f32 0.0, %v747
        %v749 = vpop.f32.mrb[0].mxu0
        %750 = vmatprep.mubr.bf16.mxu0 %v581
        %751 = vmatmul.mubr.bf16.gmra.mrb[0].mxu0 %v580
        %v752 = vpop.f32.mrb[0].mxu0
        %v753 = vadd.f32 0.0, %v752
        %v754 = vpop.f32.mrb[0].mxu0
        %v755 = vpop.f32.mrb[0].mxu0
        %v756 = vadd.f32 0.0, %v755
        %v757 = vpop.f32.mrb[0].mxu0
        %758 = vdwg.mxu0
        %v759 = vpack.c.bf16 %v748, %v745
        %v760 = vpack.c.bf16 %v756, %v753
        %v761 = vld [vmem:[%s4] sm:$0x1]
        %v763 = vpack.i.b16 %v761, %v761
        %v765 = vlaneseq
        %v766 = vshrl.u32 %v765, 7
        %v767 = vsub.s32 0, %v766
        %v768 = vrot.slane %v763, %v767
        %v769 = vadd.bf16 %v759, %v768
        %v770 = vadd.bf16 %v760, %v768
        %v771 = vmax.bf16 %v769, 0
        %v772 = vmax.bf16 %v770, 0
        %v773 = vld [vmem:[%s5] sm:$0xf]
        %v774 = vld [vmem:[%s5 + $0x4] sm:$0xf]
        %v775 = vld [vmem:[%s5 + $0x8] sm:$0xf]
        %v776 = vld [vmem:[%s5 + $0xc] sm:$0xf]
        %v777 = vld [vmem:[%s5 + $0x10] sm:$0xf]
        %v778 = vld [vmem:[%s5 + $0x14] sm:$0xf]
        %v779 = vld [vmem:[%s5 + $0x18] sm:$0xf]
        %v780 = vld [vmem:[%s5 + $0x1c] sm:$0xf]
        %v781 = vld [vmem:[%s5 + $0x20] sm:$0xf]
        %v782 = vld [vmem:[%s5 + $0x24] sm:$0xf]
        %v783 = vld [vmem:[%s5 + $0x28] sm:$0xf]
        %v784 = vld [vmem:[%s5 + $0x2c] sm:$0xf]
        %v785 = vld [vmem:[%s5 + $0x30] sm:$0xf]
        %v786 = vld [vmem:[%s5 + $0x34] sm:$0xf]
        %v787 = vld [vmem:[%s5 + $0x38] sm:$0xf]
        %v788 = vld [vmem:[%s5 + $0x3c] sm:$0xf]
        %v805 = vunpack.c.l.b16 %v773
        %v806 = vunpack.c.l.b16 %v774
        %v807 = vunpack.c.l.b16 %v775
        %v808 = vunpack.c.l.b16 %v776
        %v809 = vunpack.c.l.b16 %v777
        %v810 = vunpack.c.l.b16 %v778
        %v811 = vunpack.c.l.b16 %v779
        %v812 = vunpack.c.l.b16 %v780
        %v813 = vunpack.c.l.b16 %v781
        %v814 = vunpack.c.l.b16 %v782
        %v815 = vunpack.c.l.b16 %v783
        %v816 = vunpack.c.l.b16 %v784
        %v817 = vunpack.c.l.b16 %v785
        %v818 = vunpack.c.l.b16 %v786
        %v819 = vunpack.c.l.b16 %v787
        %v820 = vunpack.c.l.b16 %v788
        %v821 = vpack.c.b16 %v806, %v805
        %v822 = vpack.c.b16 %v808, %v807
        %v823 = vpack.c.b16 %v810, %v809
        %v824 = vpack.c.b16 %v812, %v811
        %v825 = vpack.c.b16 %v814, %v813
        %v826 = vpack.c.b16 %v816, %v815
        %v827 = vpack.c.b16 %v818, %v817
        %v828 = vpack.c.b16 %v820, %v819
        %837 = vmatprep.subr.bf16.mxu0 0
        %838 = vmatpush1.bf16.msra.mxu0 %v821
        %839 = vmatprep.subr.bf16.mxu0 0
        %840 = vmatpush1.bf16.msra.mxu0 %v822
        %841 = vmatprep.subr.bf16.mxu0 0
        %842 = vmatpush1.bf16.msra.mxu0 %v823
        %843 = vmatprep.subr.bf16.mxu0 0
        %844 = vmatpush1.bf16.msra.mxu0 %v824
        %845 = vmatprep.subr.bf16.mxu0 0
        %846 = vmatpush1.bf16.msra.mxu0 %v825
        %847 = vmatprep.subr.bf16.mxu0 0
        %848 = vmatpush1.bf16.msra.mxu0 %v826
        %849 = vmatprep.subr.bf16.mxu0 0
        %850 = vmatpush1.bf16.msra.mxu0 %v827
        %851 = vmatprep.subr.bf16.mxu0 0
        %852 = vmatpush1.bf16.msra.mxu0 %v828
        %853 = vmatprep.subr.bf16.mxu0 0
        %854 = vmatpush1.bf16.msra.mxu0 0
        %855 = vmatprep.subr.bf16.mxu0 0
        %856 = vmatpush1.bf16.msra.mxu0 0
        %857 = vmatprep.subr.bf16.mxu0 0
        %858 = vmatpush1.bf16.msra.mxu0 0
        %859 = vmatprep.subr.bf16.mxu0 0
        %860 = vmatpush1.bf16.msra.mxu0 0
        %861 = vmatprep.subr.bf16.mxu0 0
        %862 = vmatpush1.bf16.msra.mxu0 0
        %863 = vmatprep.subr.bf16.mxu0 0
        %864 = vmatpush1.bf16.msra.mxu0 0
        %865 = vmatprep.subr.bf16.mxu0 0
        %866 = vmatpush1.bf16.msra.mxu0 0
        %867 = vmatprep.subr.bf16.mxu0 0
        %868 = vmatpush1.bf16.msra.mxu0 0
        %869 = vmatprep.mubr.bf16.mxu0 0
        %870 = vmatmul.mubr.bf16.gmra.mrb[0].mxu0 %v771
        %v871 = vpop.f32.mrb[0].mxu0
        %v872 = vadd.f32 0.0, %v871
        %v873 = vpop.f32.mrb[0].mxu0
        %v874 = vpop.f32.mrb[0].mxu0
        %v875 = vadd.f32 0.0, %v874
        %v876 = vpop.f32.mrb[0].mxu0
        %877 = vmatprep.mubr.bf16.mxu0 0
        %878 = vmatmul.mubr.bf16.gmra.mrb[0].mxu0 %v772
        %v879 = vpop.f32.mrb[0].mxu0
        %v880 = vadd.f32 0.0, %v879
        %v881 = vpop.f32.mrb[0].mxu0
        %v882 = vpop.f32.mrb[0].mxu0
        %v883 = vadd.f32 0.0, %v882
        %v884 = vpop.f32.mrb[0].mxu0
        %885 = vdwg.mxu0
        %v886 = vpack.c.bf16 %v875, %v872
        %v887 = vpack.c.bf16 %v883, %v880
        %v888 = vld [vmem:[%s6] sm:$0x1]
        %v890 = vpack.i.b16 %v888, %v888
        %v892 = vlaneseq
        %v893 = vshrl.u32 %v892, 7
        %v894 = vsub.s32 0, %v893
        %v895 = vrot.slane %v890, %v894
        %v896 = vadd.bf16 %v886, %v895
        %v897 = vadd.bf16 %v887, %v895
        %v898 = vmax.bf16 %v896, 0
        %v899 = vmax.bf16 %v897, 0
        %v900 = vld [vmem:[%s7] sm:$0xf]
        %v901 = vld [vmem:[%s7 + $0x4] sm:$0xf]
        %v902 = vld [vmem:[%s7 + $0x8] sm:$0xf]
        %v903 = vld [vmem:[%s7 + $0xc] sm:$0xf]
        %v904 = vld [vmem:[%s7 + $0x10] sm:$0xf]
        %v905 = vld [vmem:[%s7 + $0x14] sm:$0xf]
        %v906 = vld [vmem:[%s7 + $0x18] sm:$0xf]
        %v907 = vld [vmem:[%s7 + $0x1c] sm:$0xf]
        %v908 = vld [vmem:[%s8] sm:$0x1]
        %v910 = vlaneseq
        %v911 = vshrl.u32 %v910, 7
        %v912 = vsub.s32 0, %v911
        %v913 = vrot.slane %v908, %v912
        %v923 = vunpack.c.l.b16 %v900
        %v924 = vunpack.c.l.b16 %v901
        %v925 = vunpack.c.l.b16 %v902
        %v926 = vunpack.c.l.b16 %v903
        %v927 = vunpack.c.l.b16 %v904
        %v928 = vunpack.c.l.b16 %v905
        %v929 = vunpack.c.l.b16 %v906
        %v930 = vunpack.c.l.b16 %v907
        %v931 = vpack.c.b16 %v924, %v923
        %v932 = vpack.c.b16 %v926, %v925
        %v933 = vpack.c.b16 %v928, %v927
        %v934 = vpack.c.b16 %v930, %v929
        %vm939 = vcmask 523264
        %v941 = vsel %vm939, %v898, 0
        %v944 = vsel %vm939, %v899, 0
        %946 = vmatprep.subr.bf16.mxu0 0
        %947 = vmatpush1.bf16.msra.mxu0 %v931
        %948 = vmatprep.subr.bf16.mxu0 0
        %949 = vmatpush1.bf16.msra.mxu0 %v932
        %950 = vmatprep.subr.bf16.mxu0 0
        %951 = vmatpush1.bf16.msra.mxu0 %v933
        %952 = vmatprep.subr.bf16.mxu0 0
        %953 = vmatpush1.bf16.msra.mxu0 %v934
        %954 = vmatprep.subr.bf16.mxu0 0
        %955 = vmatpush1.bf16.msra.mxu0 0
        %956 = vmatprep.subr.bf16.mxu0 0
        %957 = vmatpush1.bf16.msra.mxu0 0
        %958 = vmatprep.subr.bf16.mxu0 0
        %959 = vmatpush1.bf16.msra.mxu0 0
        %960 = vmatprep.subr.bf16.mxu0 0
        %961 = vmatpush1.bf16.msra.mxu0 0
        %962 = vmatprep.subr.bf16.mxu0 0
        %963 = vmatpush1.bf16.msra.mxu0 0
        %964 = vmatprep.subr.bf16.mxu0 0
        %965 = vmatpush1.bf16.msra.mxu0 0
        %966 = vmatprep.subr.bf16.mxu0 0
        %967 = vmatpush1.bf16.msra.mxu0 0
        %968 = vmatprep.subr.bf16.mxu0 0
        %969 = vmatpush1.bf16.msra.mxu0 0
        %970 = vmatprep.subr.bf16.mxu0 0
        %971 = vmatpush1.bf16.msra.mxu0 0
        %972 = vmatprep.subr.bf16.mxu0 0
        %973 = vmatpush1.bf16.msra.mxu0 0
        %974 = vmatprep.subr.bf16.mxu0 0
        %975 = vmatpush1.bf16.msra.mxu0 0
        %976 = vmatprep.subr.bf16.mxu0 0
        %977 = vmatpush1.bf16.msra.mxu0 0
        %978 = vmatprep.mubr.bf16.mxu0 0
        %979 = vmatmul.mubr.bf16.gmra.mrb[0].mxu0 %v941
        %v980 = vpop.f32.mrb[0].mxu0
        %v981 = vadd.f32 %v913, %v980
        %v982 = vpop.f32.mrb[0].mxu0
        %v983 = vpop.f32.mrb[0].mxu0
        %v984 = vadd.f32 %v913, %v983
        %v985 = vpop.f32.mrb[0].mxu0
        %986 = vmatprep.mubr.bf16.mxu0 0
        %987 = vmatmul.mubr.bf16.gmra.mrb[0].mxu0 %v944
        %v988 = vpop.f32.mrb[0].mxu0
        %v989 = vadd.f32 %v913, %v988
        %v990 = vpop.f32.mrb[0].mxu0
        %v991 = vpop.f32.mrb[0].mxu0
        %v992 = vadd.f32 %v913, %v991
        %v993 = vpop.f32.mrb[0].mxu0
        %994 = vdwg.mxu0
        %v995 = vpack.c.bf16 %v984, %v981
        %v996 = vpack.c.bf16 %v992, %v989
        %v999 = vunpack.c.l.b16 %v995
        %v1000 = vunpack.c.h.b16 %v995
        %v1001 = vunpack.c.l.b16 %v996
        %v1002 = vunpack.c.h.b16 %v996
        %v1003 = vpack.c.b16 %v999, %v999
        %v1004 = vpack.c.b16 %v1000, %v1000
        %v1005 = vpack.c.b16 %v1001, %v1001
        %v1006 = vpack.c.b16 %v1002, %v1002
        %1011 = vst [vmem:[%s364] sm:$0xf] %v1003
        %1012 = vst [vmem:[%s364 + $0x4] sm:$0xf] %v1004
        %1013 = vst [vmem:[%s364 + $0x8] sm:$0xf] %v1005
        %1014 = vst [vmem:[%s364 + $0xc] sm:$0xf] %v1006
        %s1015 = smul.u32 4, %s22
        %p1016 = scmp.lt.s32.totalorder %s1015, 7
        %s1017 = scalar_select %p1016, %s1015, 7
        %s1018 = smul.addr %s1017, 4
        %s1019 = scalar_lea.vmem %s9, %s1018
        // Predicated region
        $region65: #{ramnet_forward.1} parent=55 // pred_check
          %p1020 = pneg %p234
        $region66: #{ramnet_forward.1} parent=55 // pred_check_branch
          %1022 = sbr.rel (%p1020) target = $region68
        $region67: #{ramnet_forward.1} parent=55 // pred_region
          %s1023 = smul.u32 4, %s22
        $region68: #{ramnet_forward.1} parent=55 // pred_fallthru
          _
      $region56: #{ramnet_forward.1} parent=5 // pred_fallthru
        _
      %p1024 = scmp.le.s32.totalorder 2, %s17
      // Predicated region
      $region69: #{ramnet_forward.1} parent=5 // pred_check
        %p1025 = pneg %p1024
      $region70: #{ramnet_forward.1} parent=5 // pred_check_branch
        %1027 = sbr.rel (%p1025) target = $region72
      $region71: #{ramnet_forward.1} parent=5 // pred_region
        %s1028 = ssub.s32 %s17, 2
        // Predicated region
        $region73: #{ramnet_forward.1} parent=71 // pred_check
          %p1029 = pneg %p240
        $region74: #{ramnet_forward.1} parent=71 // pred_check_branch
          %1031 = sbr.rel (%p1029) target = $region76
        $region75: #{ramnet_forward.1} parent=71 // pred_region
          %s1032 = smul.u32 4, %s23
          %p1033 = scmp.lt.s32.totalorder %s1032, 7
          %s1034 = scalar_select %p1033, %s1032, 7
          %s1035 = smul.addr %s1034, 4
          %s1036 = scalar_lea.vmem %s9, %s1035
        $region76: #{ramnet_forward.1} parent=71 // pred_fallthru
          _
      $region72: #{ramnet_forward.1} parent=5 // pred_fallthru
        _
    $region6: #{ramnet_forward.1} parent=1 // loop_footer
      %s21 = sadd.s32 1, %s17
    $region7: #{ramnet_forward.1} parent=1 // loop_footer_branch
      %16 = sbr.rel target = $region3
    $region8: #{ramnet_forward.1} parent=1 // loop_exit
      _
    %1037 = vsyncpa [#allocation3], 1
    %s1038 = scalar_lea.sflag [#allocation3], 1
    %1039 = vsyncpa %s1038, 1
    %1040 = vsyncpa [#allocation5], 1

</llo_original>
